<compile_context>
chip_gen: v5e
topology: v5e:2x2
jax: 0.10.0
libtpu: 0.0.40
codegen_flags: <defaults>
</compile_context>

<pallas_src>
from functools import partial

import jax
import jax.numpy as jnp
from jax.experimental import pallas as pl
from jax.experimental.pallas import tpu as pltpu

LANE = 128
SUBLANE = 8


def _round_up(v, m):
    return (v + m - 1) // m * m


def _make_kernel(nxp):
    """nxp = padded nx; column split point of the fused first-layer output."""

    def kernel(x_ref, u_ref, wfx_ref, wfu_ref, bf_ref,
               w1_ref, b1_ref, w2_ref, b2_ref, out_ref):
        # Fused first layer: columns [0, nxp) hold the skip (net_lin) output,
        # columns [nxp, nxp+hp) hold hidden layer 0.  The x/u concat is folded in
        # by splitting the fused weight by input rows.
        a = (jnp.dot(x_ref[...], wfx_ref[...], preferred_element_type=jnp.float32)
             + jnp.dot(u_ref[...], wfu_ref[...], preferred_element_type=jnp.float32)
             + bf_ref[...])

        lin = a[:, :nxp]                       # skip branch (tile-aligned slice)
        h = jnp.tanh(a[:, nxp:])               # hidden layer 0 + Tanh
        h = jnp.tanh(jnp.dot(h, w1_ref[...], preferred_element_type=jnp.float32)
                     + b1_ref[...])            # hidden layer 1 + Tanh
        out = lin + jnp.dot(h, w2_ref[...], preferred_element_type=jnp.float32) + b2_ref[...]
        out_ref[...] = out.astype(out_ref.dtype)

    return kernel


@partial(jax.jit, static_argnames=("nxp", "hp"))
def state_net_forward(x, u, weights, *, nxp, hp):
    """x: (B, nx), u: (B, *nu). Returns (B, nx).

    `weights` (arrays only) and (nxp, hp) come from prepare_kernel_params.
    """
    B, nx = x.shape
    u_flat = u.reshape(B, -1)
    nu = u_flat.shape[1]
    nout0 = nxp + hp

    # Batch tiling: TB multiple of 8 (f32 sublane); pad batch with zero rows.
    TB = LANE if B > LANE else _round_up(B, SUBLANE)
    B_pad = _round_up(B, TB)
    if B_pad != B:
        x = jnp.pad(x, ((0, B_pad - B), (0, 0)))
        u_flat = jnp.pad(u_flat, ((0, B_pad - B), (0, 0)))
    grid = (B_pad // TB,)

    flops = 2 * B_pad * (nx * nout0 + nu * nout0 + hp * hp + hp * nxp)
    transcendentals = 2 * B_pad * hp
    bytes_accessed = 4 * (x.size + u_flat.size + B_pad * nxp
                          + sum(int(w.size) for w in weights.values()))

    out = pl.pallas_call(
        _make_kernel(nxp),
        out_shape=jax.ShapeDtypeStruct((B_pad, nxp), jnp.float32),
        grid=grid,
        in_specs=[
            pl.BlockSpec((TB, nx), lambda i: (i, 0)),          # x block
            pl.BlockSpec((TB, nu), lambda i: (i, 0)),          # u block
            pl.BlockSpec((nx, nout0), lambda i: (0, 0)),       # fused W, x rows
            pl.BlockSpec((nu, nout0), lambda i: (0, 0)),       # fused W, u rows
            pl.BlockSpec((1, nout0), lambda i: (0, 0)),        # fused bias
            pl.BlockSpec((hp, hp), lambda i: (0, 0)),          # W1
            pl.BlockSpec((1, hp), lambda i: (0, 0)),           # b1
            pl.BlockSpec((hp, nxp), lambda i: (0, 0)),         # W2
            pl.BlockSpec((1, nxp), lambda i: (0, 0)),          # b2
        ],
        out_specs=pl.BlockSpec((TB, nxp), lambda i: (i, 0)),
        compiler_params=pltpu.CompilerParams(dimension_semantics=("parallel",)),
        cost_estimate=pl.CostEstimate(flops=flops,
                                      transcendentals=transcendentals,
                                      bytes_accessed=bytes_accessed),
    )(x, u_flat, weights["wfx"], weights["wfu"], weights["bf"],
      weights["w1"], weights["b1"], weights["w2"], weights["b2"])

    return out[:B, :nx]


def init_params(key, nx, nu_prod, hidden):
    """Logical (unpadded) parameters matching the PyTorch module's shapes.
    Weights stored transposed: (in_features, out_features)."""
    n_in = nx + nu_prod
    ks = jax.random.split(key, 8)

    def w(k, i, o):
        return jax.random.uniform(k, (i, o), jnp.float32, -0.1, 0.1)

    def b(k, o):
        return jax.random.uniform(k, (1, o), jnp.float32, -0.1, 0.1)

    return {
        # simple_res_net.net_lin : Linear(n_in, nx)
        "wlin": w(ks[0], n_in, nx), "blin": b(ks[1], nx),
        # feed_forward_nn: Linear(n_in,H) -> Tanh -> Linear(H,H) -> Tanh -> Linear(H,nx)
        "w0": w(ks[2], n_in, hidden), "b0": b(ks[3], hidden),
        "w1": w(ks[4], hidden, hidden), "b1": b(ks[5], hidden),
        "w2": w(ks[6], hidden, nx), "b2": b(ks[7], nx),
    }


def prepare_kernel_params(p, nx, nu_prod, hidden):
    """Build lane-dense, fused kernel weights (done once, offline).

    Returns (weights_dict_of_arrays, dims_dict_of_static_ints)."""
    nxp = _round_up(nx, LANE)
    hp = _round_up(hidden, LANE)
    nout0 = nxp + hp
    n_in = nx + nu_prod

    # Fused first layer: columns [0,nxp) = net_lin, columns [nxp,nxp+hidden) = ffn layer 0.
    wf = jnp.zeros((n_in, nout0), jnp.float32)
    wf = wf.at[:, :nx].set(p["wlin"]).at[:, nxp:nxp + hidden].set(p["w0"])
    bf = (jnp.zeros((1, nout0), jnp.float32)
          .at[:, :nx].set(p["blin"]).at[:, nxp:nxp + hidden].set(p["b0"]))

    w1 = jnp.zeros((hp, hp), jnp.float32).at[:hidden, :hidden].set(p["w1"])
    b1 = jnp.zeros((1, hp), jnp.float32).at[:, :hidden].set(p["b1"])
    w2 = jnp.zeros((hp, nxp), jnp.float32).at[:hidden, :nx].set(p["w2"])
    b2 = jnp.zeros((1, nxp), jnp.float32).at[:, :nx].set(p["b2"])

    weights = {
        "wfx": wf[:nx],       # fused weight rows consumed by x
        "wfu": wf[nx:],       # fused weight rows consumed by u  (x@Wx + u@Wu == cat([x,u])@W)
        "bf": bf, "w1": w1, "b1": b1, "w2": w2, "b2": b2,
    }
    dims = {"nxp": nxp, "hp": hp}
    return weights, dims


def _reference(x, u, p):
    B = x.shape[0]
    z = jnp.concatenate([x, u.reshape(B, -1)], axis=1)
    lin = z @ p["wlin"] + p["blin"]
    h = jnp.tanh(z @ p["w0"] + p["b0"])
    h = jnp.tanh(h @ p["w1"] + p["b1"])
    return lin + h @ p["w2"] + p["b2"]


if __name__ == "__main__":
    B, nx, nu, hidden = 8, 4, 3, 64   # module default n_nodes_per_layer=64

    key = jax.random.PRNGKey(0)
    kx, ku, kp_key = jax.random.split(key, 3)
    x = jax.random.normal(kx, (B, nx), jnp.float32)
    u = jax.random.normal(ku, (B, nu), jnp.float32)

    params = init_params(kp_key, nx, nu, hidden)
    weights, dims = prepare_kernel_params(params, nx, nu, hidden)

    out = jax.block_until_ready(state_net_forward(x, u, weights, **dims))
    ref = _reference(x, u, params)
    assert out.shape == (B, nx)
    assert jnp.allclose(out, ref, atol=1e-5, rtol=1e-5)

    # Non-multiple-of-8 batch and multi-dim u (exercises u.view(B,-1) and batch padding).
    B2 = 5
    x2 = jax.random.normal(kx, (B2, nx), jnp.float32)
    u2 = jax.random.normal(ku, (B2, nu, 1), jnp.float32)
    out2 = jax.block_until_ready(state_net_forward(x2, u2, weights, **dims))
    ref2 = _reference(x2, u2, params)
    assert out2.shape == (B2, nx)
    assert jnp.allclose(out2, ref2, atol=1e-5, rtol=1e-5)

    print("KERNEL_OK")
</pallas_src>

<mosaic_0001>
module attributes {stable_mosaic.version = 11 : i64} {
  func.func @kernel(%arg0: i32, %arg1: memref<8x4xf32, #tpu.memory_space<vmem>>, %arg2: memref<8x3xf32, #tpu.memory_space<vmem>>, %arg3: memref<4x256xf32, #tpu.memory_space<vmem>>, %arg4: memref<3x256xf32, #tpu.memory_space<vmem>>, %arg5: memref<1x256xf32, #tpu.memory_space<vmem>>, %arg6: memref<128x128xf32, #tpu.memory_space<vmem>>, %arg7: memref<1x128xf32, #tpu.memory_space<vmem>>, %arg8: memref<128x128xf32, #tpu.memory_space<vmem>>, %arg9: memref<1x128xf32, #tpu.memory_space<vmem>>, %arg10: memref<8x128xf32, #tpu.memory_space<vmem>>) attributes {dimension_semantics = [#tpu.dimension_semantics<parallel>], iteration_bounds = array<i64: 1>, scalar_prefetch = 0 : i64, scratch_operands = 0 : i64, tpu.core_type = #tpu.core_type<tc>, window_params = [{transform_indices = @transform_0, window_bounds = array<i64: 8, 4>}, {transform_indices = @transform_1, window_bounds = array<i64: 8, 3>}, {pipeline_mode = #tpu.pipeline_mode<synchronous>, transform_indices = @transform_2, window_bounds = array<i64: 4, 256>}, {pipeline_mode = #tpu.pipeline_mode<synchronous>, transform_indices = @transform_3, window_bounds = array<i64: 3, 256>}, {pipeline_mode = #tpu.pipeline_mode<synchronous>, transform_indices = @transform_4, window_bounds = array<i64: 1, 256>}, {pipeline_mode = #tpu.pipeline_mode<synchronous>, transform_indices = @transform_5, window_bounds = array<i64: 128, 128>}, {pipeline_mode = #tpu.pipeline_mode<synchronous>, transform_indices = @transform_6, window_bounds = array<i64: 1, 128>}, {pipeline_mode = #tpu.pipeline_mode<synchronous>, transform_indices = @transform_7, window_bounds = array<i64: 128, 128>}, {pipeline_mode = #tpu.pipeline_mode<synchronous>, transform_indices = @transform_8, window_bounds = array<i64: 1, 128>}, {transform_indices = @transform_9, window_bounds = array<i64: 8, 128>}]} {
    %c0 = arith.constant 0 : index
    %c0_0 = arith.constant 0 : index
    %0 = vector.load %arg1[%c0, %c0_0] : memref<8x4xf32, #tpu.memory_space<vmem>>, vector<8x4xf32>
    %c0_1 = arith.constant 0 : index
    %c0_2 = arith.constant 0 : index
    %1 = vector.load %arg3[%c0_1, %c0_2] : memref<4x256xf32, #tpu.memory_space<vmem>>, vector<4x256xf32>
    %cst = arith.constant dense<0.000000e+00> : vector<8x256xf32>
    %2 = tpu.matmul %0, %1, %cst {dimension_numbers = #tpu.dot_dimension_numbers<[1], [0], [0], [1], [0, 0, 1, 1], [], []>} : vector<8x4xf32>, vector<4x256xf32>, vector<8x256xf32> -> vector<8x256xf32>
    %c0_3 = arith.constant 0 : index
    %c0_4 = arith.constant 0 : index
    %3 = vector.load %arg2[%c0_3, %c0_4] : memref<8x3xf32, #tpu.memory_space<vmem>>, vector<8x3xf32>
    %c0_5 = arith.constant 0 : index
    %c0_6 = arith.constant 0 : index
    %4 = vector.load %arg4[%c0_5, %c0_6] : memref<3x256xf32, #tpu.memory_space<vmem>>, vector<3x256xf32>
    %cst_7 = arith.constant dense<0.000000e+00> : vector<8x256xf32>
    %5 = tpu.matmul %3, %4, %cst_7 {dimension_numbers = #tpu.dot_dimension_numbers<[1], [0], [0], [1], [0, 0, 1, 1], [], []>} : vector<8x3xf32>, vector<3x256xf32>, vector<8x256xf32> -> vector<8x256xf32>
    %6 = arith.addf %2, %5 : vector<8x256xf32>
    %c0_8 = arith.constant 0 : index
    %c0_9 = arith.constant 0 : index
    %7 = vector.load %arg5[%c0_8, %c0_9] : memref<1x256xf32, #tpu.memory_space<vmem>>, vector<1x256xf32>
    %8 = vector.broadcast %7 : vector<1x256xf32> to vector<8x256xf32>
    %9 = arith.addf %6, %8 : vector<8x256xf32>
    %10 = vector.extract_strided_slice %9 {offsets = [0, 0], sizes = [8, 128], strides = [1, 1]} : vector<8x256xf32> to vector<8x128xf32>
    %11 = vector.extract_strided_slice %9 {offsets = [0, 128], sizes = [8, 128], strides = [1, 1]} : vector<8x256xf32> to vector<8x128xf32>
    %12 = math.tanh %11 : vector<8x128xf32>
    %c0_10 = arith.constant 0 : index
    %c0_11 = arith.constant 0 : index
    %13 = vector.load %arg6[%c0_10, %c0_11] : memref<128x128xf32, #tpu.memory_space<vmem>>, vector<128x128xf32>
    %cst_12 = arith.constant dense<0.000000e+00> : vector<8x128xf32>
    %14 = tpu.matmul %12, %13, %cst_12 {dimension_numbers = #tpu.dot_dimension_numbers<[1], [0], [0], [1], [0, 0, 1, 1], [], []>} : vector<8x128xf32>, vector<128x128xf32>, vector<8x128xf32> -> vector<8x128xf32>
    %c0_13 = arith.constant 0 : index
    %c0_14 = arith.constant 0 : index
    %15 = vector.load %arg7[%c0_13, %c0_14] : memref<1x128xf32, #tpu.memory_space<vmem>>, vector<1x128xf32>
    %16 = vector.broadcast %15 : vector<1x128xf32> to vector<8x128xf32>
    %17 = arith.addf %14, %16 : vector<8x128xf32>
    %18 = math.tanh %17 : vector<8x128xf32>
    %c0_15 = arith.constant 0 : index
    %c0_16 = arith.constant 0 : index
    %19 = vector.load %arg8[%c0_15, %c0_16] : memref<128x128xf32, #tpu.memory_space<vmem>>, vector<128x128xf32>
    %cst_17 = arith.constant dense<0.000000e+00> : vector<8x128xf32>
    %20 = tpu.matmul %18, %19, %cst_17 {dimension_numbers = #tpu.dot_dimension_numbers<[1], [0], [0], [1], [0, 0, 1, 1], [], []>} : vector<8x128xf32>, vector<128x128xf32>, vector<8x128xf32> -> vector<8x128xf32>
    %21 = arith.addf %10, %20 : vector<8x128xf32>
    %c0_18 = arith.constant 0 : index
    %c0_19 = arith.constant 0 : index
    %22 = vector.load %arg9[%c0_18, %c0_19] : memref<1x128xf32, #tpu.memory_space<vmem>>, vector<1x128xf32>
    %23 = vector.broadcast %22 : vector<1x128xf32> to vector<8x128xf32>
    %24 = arith.addf %21, %23 : vector<8x128xf32>
    %c0_20 = arith.constant 0 : index
    %c0_21 = arith.constant 0 : index
    %25 = vector.load %arg10[%c0_20, %c0_21] : memref<8x128xf32, #tpu.memory_space<vmem>>, vector<8x128xf32>
    tpu.vector_store %arg10[%c0_20, %c0_21], %24 {strides = array<i32>} : memref<8x128xf32, #tpu.memory_space<vmem>>, vector<8x128xf32>,
    return
  }
  func.func @transform_0(%arg0: i32) -> (i32, i32) {
    %c0_i32 = arith.constant 0 : i32
    %c0_i32_0 = arith.constant 0 : i32
    return %arg0, %c0_i32 : i32, i32
  }
  func.func @transform_1(%arg0: i32) -> (i32, i32) {
    %c0_i32 = arith.constant 0 : i32
    %c0_i32_0 = arith.constant 0 : i32
    return %arg0, %c0_i32 : i32, i32
  }
  func.func @transform_2(%arg0: i32) -> (i32, i32) {
    %c0_i32 = arith.constant 0 : i32
    %c0_i32_0 = arith.constant 0 : i32
    %c0_i32_1 = arith.constant 0 : i32
    return %c0_i32, %c0_i32_0 : i32, i32
  }
  func.func @transform_3(%arg0: i32) -> (i32, i32) {
    %c0_i32 = arith.constant 0 : i32
    %c0_i32_0 = arith.constant 0 : i32
    %c0_i32_1 = arith.constant 0 : i32
    return %c0_i32, %c0_i32_0 : i32, i32
  }
  func.func @transform_4(%arg0: i32) -> (i32, i32) {
    %c0_i32 = arith.constant 0 : i32
    %c0_i32_0 = arith.constant 0 : i32
    %c0_i32_1 = arith.constant 0 : i32
    return %c0_i32, %c0_i32_0 : i32, i32
  }
  func.func @transform_5(%arg0: i32) -> (i32, i32) {
    %c0_i32 = arith.constant 0 : i32
    %c0_i32_0 = arith.constant 0 : i32
    %c0_i32_1 = arith.constant 0 : i32
    return %c0_i32, %c0_i32_0 : i32, i32
  }
  func.func @transform_6(%arg0: i32) -> (i32, i32) {
    %c0_i32 = arith.constant 0 : i32
    %c0_i32_0 = arith.constant 0 : i32
    %c0_i32_1 = arith.constant 0 : i32
    return %c0_i32, %c0_i32_0 : i32, i32
  }
  func.func @transform_7(%arg0: i32) -> (i32, i32) {
    %c0_i32 = arith.constant 0 : i32
    %c0_i32_0 = arith.constant 0 : i32
    %c0_i32_1 = arith.constant 0 : i32
    return %c0_i32, %c0_i32_0 : i32, i32
  }
  func.func @transform_8(%arg0: i32) -> (i32, i32) {
    %c0_i32 = arith.constant 0 : i32
    %c0_i32_0 = arith.constant 0 : i32
    %c0_i32_1 = arith.constant 0 : i32
    return %c0_i32, %c0_i32_0 : i32, i32
  }
  func.func @transform_9(%arg0: i32) -> (i32, i32) {
    %c0_i32 = arith.constant 0 : i32
    %c0_i32_0 = arith.constant 0 : i32
    return %arg0, %c0_i32 : i32, i32
  }
}

</mosaic_0001>

<llo_original>
// kernel: state_net_forward.1
$region0: #{state_net_forward.1}
  #allocation0 [shape = 'u32[]', space=smem, size = 0x4, offset = 0x4, fixed_abs, tag = 'smem constant byte address 0x4 - core index']
  #allocation1 [shape = 'u32[72,128]{1,0:T(1,128)}', space=vmem, size = 0x9000, scoped, tag = 'internal scratch']
  %s0 = inlined_call_operand.vmem [shape: f32[8,4], index: 0, kind: input, shape index: {}]
  %s1 = inlined_call_operand.vmem [shape: f32[8,3], index: 1, kind: input, shape index: {}]
  %s2 = inlined_call_operand.vmem [shape: f32[4,256], index: 2, kind: input, shape index: {}]
  %s3 = inlined_call_operand.vmem [shape: f32[3,256], index: 3, kind: input, shape index: {}]
  %s4 = inlined_call_operand.vmem [shape: f32[1,256], index: 4, kind: input, shape index: {}]
  %s5 = inlined_call_operand.hbm [shape: f32[128,128], index: 5, kind: input, shape index: {}]
  %s6 = inlined_call_operand.vmem [shape: f32[1,128], index: 6, kind: input, shape index: {}]
  %s7 = inlined_call_operand.hbm [shape: f32[128,128], index: 7, kind: input, shape index: {}]
  %s8 = inlined_call_operand.vmem [shape: f32[1,128], index: 8, kind: input, shape index: {}]
  %s9 = inlined_call_operand.vmem [shape: f32[8,128], index: 9, kind: output, shape index: {}]
  %s10 = sld [smem:[#allocation0]]
  $region54: #{state_net_forward.1} parent=0
    _
  %s12 = ssub.s32 1, %s10
  %s13 = scalar_select 0, %s12, %s10
  $region1: #{state_net_forward.1} parent=0
    #allocation2 [shape = 'u8[65536]{0}', space=vmem, size = 0x10000, scoped, tag = 'input window, operand 5, single buffered']
    #allocation3 [shape = 's32[1]{0}', space=sflag, size = 0x4, scoped, tag = 'scoped memory for state_net_forward.1']
    #allocation4 [shape = 'u8[65536]{0}', space=vmem, size = 0x10000, scoped, tag = 'input window, operand 7, single buffered']
    #allocation5 [shape = 's32[1]{0}', space=sflag, size = 0x4, scoped, tag = 'scoped memory for state_net_forward.1']
    %14 = vsyncpa [#allocation3], 0
    %15 = vsyncpa [#allocation5], 0
    // Predicated region
    $region2: #{state_net_forward.1} parent=1 // pred_check
      _
    $region3: #{state_net_forward.1} parent=1 // pred_check_branch
      %17 = sbr.rel (0) target = $region5
    $region4: #{state_net_forward.1} parent=1 // pred_region
      _
    $region5: #{state_net_forward.1} parent=1 // pred_fallthru
      _
    // Predicated region
    $region6: #{state_net_forward.1} parent=1 // pred_check
      _
    $region7: #{state_net_forward.1} parent=1 // pred_check_branch
      %19 = sbr.rel (0) target = $region9
    $region8: #{state_net_forward.1} parent=1 // pred_region
      _
    $region9: #{state_net_forward.1} parent=1 // pred_fallthru
      _
    // Predicated region
    $region10: #{state_net_forward.1} parent=1 // pred_check
      _
    $region11: #{state_net_forward.1} parent=1 // pred_check_branch
      %21 = sbr.rel (0) target = $region13
    $region12: #{state_net_forward.1} parent=1 // pred_region
      _
    $region13: #{state_net_forward.1} parent=1 // pred_fallthru
      _
    // Predicated region
    $region14: #{state_net_forward.1} parent=1 // pred_check
      _
    $region15: #{state_net_forward.1} parent=1 // pred_check_branch
      %23 = sbr.rel (0) target = $region17
    $region16: #{state_net_forward.1} parent=1 // pred_region
      _
    $region17: #{state_net_forward.1} parent=1 // pred_fallthru
      _
    // Predicated region
    $region18: #{state_net_forward.1} parent=1 // pred_check
      _
    $region19: #{state_net_forward.1} parent=1 // pred_check_branch
      %25 = sbr.rel (0) target = $region21
    $region20: #{state_net_forward.1} parent=1 // pred_region
      _
    $region21: #{state_net_forward.1} parent=1 // pred_fallthru
      _
    // Predicated region
    $region22: #{state_net_forward.1} parent=1 // pred_check
      _
    $region23: #{state_net_forward.1} parent=1 // pred_check_branch
      %27 = sbr.rel (0) target = $region25
    $region24: #{state_net_forward.1} parent=1 // pred_region
      %29 = vsyncadd [#allocation3], 0
      %s30 = sshll.u32 %s5, 4
      %s31 = int_to_ptr.hbm [resolvable:$true] %s30
      %s32 = sshll.u32 [#allocation2], 4
      %s33 = int_to_ptr.vmem [resolvable:$true] %s32
      %38 = dma.hbm_to_vmem [thread:$0]  %s31, 2048, %s33, [#allocation3], 128, 128, 8
    $region25: #{state_net_forward.1} parent=1 // pred_fallthru
      _
    // Predicated region
    $region26: #{state_net_forward.1} parent=1 // pred_check
      _
    $region27: #{state_net_forward.1} parent=1 // pred_check_branch
      %40 = sbr.rel (0) target = $region29
    $region28: #{state_net_forward.1} parent=1 // pred_region
      _
    $region29: #{state_net_forward.1} parent=1 // pred_fallthru
      _
    // Predicated region
    $region30: #{state_net_forward.1} parent=1 // pred_check
      _
    $region31: #{state_net_forward.1} parent=1 // pred_check_branch
      %42 = sbr.rel (0) target = $region33
    $region32: #{state_net_forward.1} parent=1 // pred_region
      %44 = vsyncadd [#allocation5], 0
      %s45 = sshll.u32 %s7, 4
      %s46 = int_to_ptr.hbm [resolvable:$true] %s45
      %s47 = sshll.u32 [#allocation4], 4
      %s48 = int_to_ptr.vmem [resolvable:$true] %s47
      %53 = dma.hbm_to_vmem [thread:$0]  %s46, 2048, %s48, [#allocation5], 128, 128, 8
    $region33: #{state_net_forward.1} parent=1 // pred_fallthru
      _
    // Predicated region
    $region34: #{state_net_forward.1} parent=1 // pred_check
      _
    $region35: #{state_net_forward.1} parent=1 // pred_check_branch
      %55 = sbr.rel (0) target = $region37
    $region36: #{state_net_forward.1} parent=1 // pred_region
      _
    $region37: #{state_net_forward.1} parent=1 // pred_fallthru
      _
    // Predicated region
    $region38: #{state_net_forward.1} parent=1 // pred_check
      _
    $region39: #{state_net_forward.1} parent=1 // pred_check_branch
      %57 = sbr.rel (0) target = $region41
    $region40: #{state_net_forward.1} parent=1 // pred_region
      %59 = dma.done [#allocation3], 2048
    $region41: #{state_net_forward.1} parent=1 // pred_fallthru
      _
    // Predicated region
    $region42: #{state_net_forward.1} parent=1 // pred_check
      _
    $region43: #{state_net_forward.1} parent=1 // pred_check_branch
      %61 = sbr.rel (0) target = $region45
    $region44: #{state_net_forward.1} parent=1 // pred_region
      %63 = dma.done [#allocation5], 2048
    $region45: #{state_net_forward.1} parent=1 // pred_fallthru
      _
    %v64 = vld [vmem:[%s0] sm:$0xff]
    %v65 = vld [vmem:[%s2] sm:$0xff]
    %v66 = vld [vmem:[%s1] sm:$0xff]
    %v67 = vld [vmem:[%s3] sm:$0x77]
    %69 = vst [vmem:[#allocation1] ss:$2 sm:$0xff] %v67
    %v70 = vld.sshfl [vmem:[#allocation1] sm:$0xff pattern:$0x75316420]
    %v71 = vld.sshfl [vmem:[#allocation1 + $0x8] sm:$0xff pattern:$0x75316420]
    %vm72 = vcmask 23552
    %v74 = vsel %vm72, %v66, 0
    %vm76 = vcmask 1042432
    %v77 = vsel %vm76, %v70, 0
    %v79 = vsel %vm76, %v71, 0
    %81 = vmatpush.msra.mxu0 0.0
    %82 = vmatpush.msra.mxu0 0.0
    %83 = vmatpush.msra.mxu0 0.0
    %84 = vmatpush.msra.mxu0 0.0
    %85 = vmatpush.msra.mxu0 0.0
    %86 = vmatpush.msra.mxu0 0.0
    %87 = vmatpush.msra.mxu0 0.0
    %88 = vmatpush.msra.mxu0 0.0
    %89 = vmatpush.msra.mxu0 0.0
    %90 = vmatpush.msra.mxu0 0.0
    %91 = vmatpush.msra.mxu0 0.0
    %92 = vmatpush.msra.mxu0 0.0
    %93 = vmatpush.msra.mxu0 0.0
    %94 = vmatpush.msra.mxu0 0.0
    %95 = vmatpush.msra.mxu0 0.0
    %96 = vmatpush.msra.mxu0 %v77
    %97 = vmatmul.f32.gmra.mxu0 %v74
    %v98 = vpop.f32.mrf.mxu0
    %v99 = vadd.f32 0.0, %v98
    %100 = vdwg.mxu0
    %101 = vmatpush.msra.mxu0 0.0
    %102 = vmatpush.msra.mxu0 0.0
    %103 = vmatpush.msra.mxu0 0.0
    %104 = vmatpush.msra.mxu0 0.0
    %105 = vmatpush.msra.mxu0 0.0
    %106 = vmatpush.msra.mxu0 0.0
    %107 = vmatpush.msra.mxu0 0.0
    %108 = vmatpush.msra.mxu0 0.0
    %109 = vmatpush.msra.mxu0 0.0
    %110 = vmatpush.msra.mxu0 0.0
    %111 = vmatpush.msra.mxu0 0.0
    %112 = vmatpush.msra.mxu0 0.0
    %113 = vmatpush.msra.mxu0 0.0
    %114 = vmatpush.msra.mxu0 0.0
    %115 = vmatpush.msra.mxu0 0.0
    %116 = vmatpush.msra.mxu0 %v79
    %117 = vmatmul.f32.gmra.mxu0 %v74
    %v118 = vpop.f32.mrf.mxu0
    %v119 = vadd.f32 0.0, %v118
    %120 = vdwg.mxu0
    %122 = vst [vmem:[#allocation1] ss:$2 sm:$0xff] %v65
    %v123 = vld.sshfl [vmem:[#allocation1] sm:$0xff pattern:$0x75316420]
    %v124 = vld.sshfl [vmem:[#allocation1 + $0x8] sm:$0xff pattern:$0x75316420]
    %vm125 = vcmask 31744
    %v127 = vsel %vm125, %v64, 0
    %vm129 = vcmask 1043456
    %v130 = vsel %vm129, %v123, 0
    %v132 = vsel %vm129, %v124, 0
    %134 = vmatpush.msra.mxu0 0.0
    %135 = vmatpush.msra.mxu0 0.0
    %136 = vmatpush.msra.mxu0 0.0
    %137 = vmatpush.msra.mxu0 0.0
    %138 = vmatpush.msra.mxu0 0.0
    %139 = vmatpush.msra.mxu0 0.0
    %140 = vmatpush.msra.mxu0 0.0
    %141 = vmatpush.msra.mxu0 0.0
    %142 = vmatpush.msra.mxu0 0.0
    %143 = vmatpush.msra.mxu0 0.0
    %144 = vmatpush.msra.mxu0 0.0
    %145 = vmatpush.msra.mxu0 0.0
    %146 = vmatpush.msra.mxu0 0.0
    %147 = vmatpush.msra.mxu0 0.0
    %148 = vmatpush.msra.mxu0 0.0
    %149 = vmatpush.msra.mxu0 %v130
    %150 = vmatmul.f32.gmra.mxu0 %v127
    %v151 = vpop.f32.mrf.mxu0
    %v152 = vadd.f32 %v99, %v151
    %153 = vdwg.mxu0
    %154 = vmatpush.msra.mxu0 0.0
    %155 = vmatpush.msra.mxu0 0.0
    %156 = vmatpush.msra.mxu0 0.0
    %157 = vmatpush.msra.mxu0 0.0
    %158 = vmatpush.msra.mxu0 0.0
    %159 = vmatpush.msra.mxu0 0.0
    %160 = vmatpush.msra.mxu0 0.0
    %161 = vmatpush.msra.mxu0 0.0
    %162 = vmatpush.msra.mxu0 0.0
    %163 = vmatpush.msra.mxu0 0.0
    %164 = vmatpush.msra.mxu0 0.0
    %165 = vmatpush.msra.mxu0 0.0
    %166 = vmatpush.msra.mxu0 0.0
    %167 = vmatpush.msra.mxu0 0.0
    %168 = vmatpush.msra.mxu0 0.0
    %169 = vmatpush.msra.mxu0 %v132
    %170 = vmatmul.f32.gmra.mxu0 %v127
    %v171 = vpop.f32.mrf.mxu0
    %v172 = vadd.f32 %v119, %v171
    %173 = vdwg.mxu0
    %v174 = vld [vmem:[%s4] sm:$0x3]
    %v176 = vperm.slane %v174, 0
    %v177 = vperm.slane %v174, 1
    %v180 = vadd.f32 %v152, %v176
    %v181 = vadd.f32 %v172, %v177
    %v182 = vtanh.pop %v181
    %v183 = vld [vmem:[#allocation2] sm:$0xff]
    %v184 = vld [vmem:[#allocation2 + $0x8] sm:$0xff]
    %v185 = vld [vmem:[#allocation2 + $0x10] sm:$0xff]
    %v186 = vld [vmem:[#allocation2 + $0x18] sm:$0xff]
    %v187 = vld [vmem:[#allocation2 + $0x20] sm:$0xff]
    %v188 = vld [vmem:[#allocation2 + $0x28] sm:$0xff]
    %v189 = vld [vmem:[#allocation2 + $0x30] sm:$0xff]
    %v190 = vld [vmem:[#allocation2 + $0x38] sm:$0xff]
    %v191 = vld [vmem:[#allocation2 + $0x40] sm:$0xff]
    %v192 = vld [vmem:[#allocation2 + $0x48] sm:$0xff]
    %v193 = vld [vmem:[#allocation2 + $0x50] sm:$0xff]
    %v194 = vld [vmem:[#allocation2 + $0x58] sm:$0xff]
    %v195 = vld [vmem:[#allocation2 + $0x60] sm:$0xff]
    %v196 = vld [vmem:[#allocation2 + $0x68] sm:$0xff]
    %v197 = vld [vmem:[#allocation2 + $0x70] sm:$0xff]
    %v198 = vld [vmem:[#allocation2 + $0x78] sm:$0xff]
    %v199 = vld [vmem:[%s6] sm:$0x1]
    %v201 = vperm.slane %v199, 0
    %203 = vmatpush.msra.mxu0 %v198
    %204 = vmatpush.msra.mxu0 %v197
    %205 = vmatpush.msra.mxu0 %v196
    %206 = vmatpush.msra.mxu0 %v195
    %207 = vmatpush.msra.mxu0 %v194
    %208 = vmatpush.msra.mxu0 %v193
    %209 = vmatpush.msra.mxu0 %v192
    %210 = vmatpush.msra.mxu0 %v191
    %211 = vmatpush.msra.mxu0 %v190
    %212 = vmatpush.msra.mxu0 %v189
    %213 = vmatpush.msra.mxu0 %v188
    %214 = vmatpush.msra.mxu0 %v187
    %215 = vmatpush.msra.mxu0 %v186
    %216 = vmatpush.msra.mxu0 %v185
    %217 = vmatpush.msra.mxu0 %v184
    %218 = vmatpush.msra.mxu0 %v183
    %219 = vmatmul.f32.gmra.mxu0 %v182
    %v220 = vpop.f32.mrf.mxu0
    %v221 = vadd.f32 %v201, %v220
    %222 = vdwg.mxu0
    %v223 = vtanh.pop %v221
    %v224 = vld [vmem:[#allocation4] sm:$0xff]
    %v225 = vld [vmem:[#allocation4 + $0x8] sm:$0xff]
    %v226 = vld [vmem:[#allocation4 + $0x10] sm:$0xff]
    %v227 = vld [vmem:[#allocation4 + $0x18] sm:$0xff]
    %v228 = vld [vmem:[#allocation4 + $0x20] sm:$0xff]
    %v229 = vld [vmem:[#allocation4 + $0x28] sm:$0xff]
    %v230 = vld [vmem:[#allocation4 + $0x30] sm:$0xff]
    %v231 = vld [vmem:[#allocation4 + $0x38] sm:$0xff]
    %v232 = vld [vmem:[#allocation4 + $0x40] sm:$0xff]
    %v233 = vld [vmem:[#allocation4 + $0x48] sm:$0xff]
    %v234 = vld [vmem:[#allocation4 + $0x50] sm:$0xff]
    %v235 = vld [vmem:[#allocation4 + $0x58] sm:$0xff]
    %v236 = vld [vmem:[#allocation4 + $0x60] sm:$0xff]
    %v237 = vld [vmem:[#allocation4 + $0x68] sm:$0xff]
    %v238 = vld [vmem:[#allocation4 + $0x70] sm:$0xff]
    %v239 = vld [vmem:[#allocation4 + $0x78] sm:$0xff]
    %240 = vmatpush.msra.mxu0 %v239
    %241 = vmatpush.msra.mxu0 %v238
    %242 = vmatpush.msra.mxu0 %v237
    %243 = vmatpush.msra.mxu0 %v236
    %244 = vmatpush.msra.mxu0 %v235
    %245 = vmatpush.msra.mxu0 %v234
    %246 = vmatpush.msra.mxu0 %v233
    %247 = vmatpush.msra.mxu0 %v232
    %248 = vmatpush.msra.mxu0 %v231
    %249 = vmatpush.msra.mxu0 %v230
    %250 = vmatpush.msra.mxu0 %v229
    %251 = vmatpush.msra.mxu0 %v228
    %252 = vmatpush.msra.mxu0 %v227
    %253 = vmatpush.msra.mxu0 %v226
    %254 = vmatpush.msra.mxu0 %v225
    %255 = vmatpush.msra.mxu0 %v224
    %256 = vmatmul.f32.gmra.mxu0 %v223
    %v257 = vpop.f32.mrf.mxu0
    %v258 = vadd.f32 0.0, %v257
    %259 = vdwg.mxu0
    %v260 = vadd.f32 %v180, %v258
    %v261 = vld [vmem:[%s8] sm:$0x1]
    %v263 = vperm.slane %v261, 0
    %v265 = vadd.f32 %v260, %v263
    %266 = vst [vmem:[%s9] sm:$0xff] %v265
    // Predicated region
    $region46: #{state_net_forward.1} parent=1 // pred_check
      _
    $region47: #{state_net_forward.1} parent=1 // pred_check_branch
      %268 = sbr.rel (0) target = $region49
    $region48: #{state_net_forward.1} parent=1 // pred_region
      _
    $region49: #{state_net_forward.1} parent=1 // pred_fallthru
      _
    // Predicated region
    $region50: #{state_net_forward.1} parent=1 // pred_check
      _
    $region51: #{state_net_forward.1} parent=1 // pred_check_branch
      %270 = sbr.rel (0) target = $region53
    $region52: #{state_net_forward.1} parent=1 // pred_region
      _
    $region53: #{state_net_forward.1} parent=1 // pred_fallthru
      _
    %271 = vsyncpa [#allocation3], 1
    %272 = vsyncpa [#allocation5], 1

</llo_original>
